<compile_context>
chip_gen: v5e
topology: v5e:2x2
jax: 0.10.0
libtpu: 0.0.40
codegen_flags: <defaults>
</compile_context>

<pallas_src>
import functools

import jax
import jax.numpy as jnp
from jax import lax
from jax.experimental import pallas as pl
from jax.experimental.pallas import tpu as pltpu


def _res_chain_kernel(x_ref, w_ref, b_ref, o_ref, *, num_blocks, compute_dtype):
    """One row tile through the whole residual chain, L looped in-body.

    x_ref: (tm, K)      input row tile
    w_ref: (L, K, K)    VMEM-resident weight stack (constant index_map)
    b_ref: (L, 1, K)    VMEM-resident bias stack
    o_ref: (tm, K)      output row tile
    """
    x0 = x_ref[...].astype(jnp.float32)                       # (tm, K) f32

    def body(l, x):
        # MXU matmul: compute_dtype operands (bf16 on all TPU gens is fine,
        # incl. v5e), always f32 accumulation.
        y = jnp.dot(x.astype(compute_dtype), w_ref[l],
                    preferred_element_type=jnp.float32)        # (tm, K) f32
        y = y + b_ref[l].astype(jnp.float32)                   # (1, K) broadcast
        return x + jnp.maximum(y, 0.0)

    # Small static L -> fully unrolled (LLO scheduler visibility, no loop
    # overhead); large L stays a real loop to bound code size.
    x = lax.fori_loop(0, num_blocks, body, x0,
                      unroll=True if num_blocks <= 8 else False)
    o_ref[...] = x.astype(o_ref.dtype)


def _choose_tm(M, min_tiles=2):
    """Row-tile size: big (fills MXU, amortizes grid-step overhead) but with
    at least `min_tiles` tiles so v7x's two TensorCores both get work."""
    candidates = (512, 256, 128, 64, 32, 16, 8)
    for tm in candidates:
        if M % tm == 0 and M // tm >= min_tiles:
            return tm
    for tm in candidates:
        if M % tm == 0:
            return tm
    # Ragged M: rows get zero-padded in the wrapper; keep tiles modest so
    # padding waste and VMEM stay bounded.
    return int(min(256, max(8, pl.next_power_of_2(pl.cdiv(M, min_tiles)))))


# Keep the double-buffered resident W stack comfortably inside v7x's scoped
# VMEM; beyond this we fall back to per-block calls (see TODO below).
_W_RESIDENT_BUDGET_BYTES = 12 << 20


def fused_residual_chain(x, w_stack, b_stack, *, tm=None, compute_dtype=None):
    """Run X through L fused residual blocks in a single Pallas kernel.

    x:       [M, K]
    w_stack: [L, K, K]   (already cast to the desired compute dtype)
    b_stack: [L, 1, K]
    Returns  [M, K]  (same dtype as x).
    """
    M, K = x.shape
    L, Kw, Kw2 = w_stack.shape
    assert Kw == K and Kw2 == K
    assert b_stack.shape == (L, 1, K)

    if compute_dtype is None:
        compute_dtype = w_stack.dtype

    if 2 * w_stack.nbytes > _W_RESIDENT_BUDGET_BYTES and L > 1:
        # TODO(synk): for very large K*L the resident (L,K,K) stack should be
        # contraction-split (extra "arbitrary" tk grid axis) instead of this
        # simple per-block fallback (which round-trips X through HBM).
        out = x
        for l in range(L):
            out = fused_residual_chain(out, w_stack[l:l + 1], b_stack[l:l + 1],
                                       tm=tm, compute_dtype=compute_dtype)
        return out

    if tm is None:
        tm = _choose_tm(M)

    # Ragged M: pad rows (rows are independent, so zero rows are exact).
    num_tiles = pl.cdiv(M, tm)
    M_pad = num_tiles * tm
    x_in = jnp.pad(x, ((0, M_pad - M), (0, 0))) if M_pad != M else x

    kernel = functools.partial(_res_chain_kernel,
                               num_blocks=L, compute_dtype=compute_dtype)

    itemsize_x = jnp.dtype(x.dtype).itemsize
    out_bytes = M_pad * K * itemsize_x
    # W/b are resident (constant index_map) -> fetched once per call.
    cost = pl.CostEstimate(
        flops=2 * M_pad * K * K * L,
        transcendentals=0,
        bytes_accessed=x_in.nbytes + w_stack.nbytes + b_stack.nbytes + out_bytes,
    )

    # Explicit scoped-VMEM budget: x in/out double-buffered + W/b stacks
    # (budgeted at 2 buffers to be safe) + headroom.  Clipped well below
    # v7x's 64 MiB physical; >= v6e/v7x default, above v5e's 16 MiB default.
    vmem_bytes = (2 * tm * K * itemsize_x            # x in (double-buffered)
                  + 2 * tm * K * itemsize_x          # out (double-buffered)
                  + 2 * w_stack.nbytes               # resident W stack
                  + 2 * b_stack.nbytes)              # resident b stack
    vmem_limit = int(min(max(2 * vmem_bytes + (4 << 20), 32 << 20), 56 << 20))

    out = pl.pallas_call(
        kernel,
        out_shape=jax.ShapeDtypeStruct((M_pad, K), x.dtype),
        grid_spec=pltpu.PrefetchScalarGridSpec(
            num_scalar_prefetch=0,
            grid=(num_tiles,),
            in_specs=[
                # X row tile.
                pl.BlockSpec((tm, K), lambda i: (i, 0)),
                # Full weight stack, constant block index -> VMEM-resident,
                # DMA'd once per call rather than once per row tile.
                pl.BlockSpec((L, K, K), lambda i: (0, 0, 0)),
                # Full bias stack, likewise resident.
                pl.BlockSpec((L, 1, K), lambda i: (0, 0, 0)),
            ],
            out_specs=pl.BlockSpec((tm, K), lambda i: (i, 0)),
        ),
        compiler_params=pltpu.CompilerParams(
            dimension_semantics=("parallel",),
            vmem_limit_bytes=vmem_limit,
        ),
        cost_estimate=cost,
    )(x_in, w_stack, b_stack)

    return out[:M] if M_pad != M else out


class ResNetPallas:
    """JAX/Pallas equivalent of the PyTorch ResNet container.

    Each element of `blocks` is (W, b, output_flag); block(X) computes
    (X + relu(X @ W + b), output_flag), mirroring the (X, output) contract.
    Consecutive blocks up to each output_flag=True are fused into a single
    Pallas call.  Weight/bias stacks are stacked and cast once at
    construction time (not per forward).
    """

    def __init__(self, *blocks, compute_dtype=None, tm=None):
        self.blocks = list(blocks)
        self.compute_dtype = compute_dtype
        self.tm = tm

        # Pre-stack & pre-cast each fused segment ONCE.
        self._segments = []
        seg_w, seg_b = [], []
        for (w, b, output) in self.blocks:
            seg_w.append(w)
            seg_b.append(b)
            if output:
                w_stack = jnp.stack(seg_w)
                if compute_dtype is not None:
                    w_stack = w_stack.astype(compute_dtype)
                b_stack = jnp.stack(seg_b).astype(jnp.float32)
                self._segments.append((w_stack, b_stack))
                seg_w, seg_b = [], []
        # TODO(synk): blocks after the last output=True block run in the
        # PyTorch version but their results are never observable (not yielded,
        # not returned); we skip that dead compute here.

    def iter_forward(self, x):
        for (w_stack, b_stack) in self._segments:
            x = fused_residual_chain(x, w_stack, b_stack, tm=self.tm,
                                     compute_dtype=self.compute_dtype)
            yield x

    def forward(self, x):
        # Same semantics as the PyTorch module: X rebinds to each yielded
        # value; if no block yields, the input X is returned unchanged.
        for x in self.iter_forward(x):
            continue
        return x


def make_params(key, num_blocks, hidden, dtype=jnp.float32):
    blocks = []
    for i in range(num_blocks):
        key, kw, kb = jax.random.split(key, 3)
        w = jax.random.normal(kw, (hidden, hidden), dtype) * (1.0 / jnp.sqrt(hidden))
        b = jax.random.normal(kb, (1, hidden), dtype) * 0.01
        output = (i == num_blocks - 1)  # only the final block "outputs"
        blocks.append((w, b, output))
    return blocks, key


if __name__ == "__main__":
    key = jax.random.PRNGKey(0)

    M, K = 256, 128          # [batch*seq, hidden] — hidden aligned to 128 lanes
    num_blocks = 3

    blocks, key = make_params(key, num_blocks, K)
    key, kx = jax.random.split(key)
    x = jax.random.normal(kx, (M, K), jnp.float32)

    # --- f32 compute path (strict correctness check) -----------------------
    model_f32 = ResNetPallas(*blocks, compute_dtype=jnp.float32)
    out = jax.block_until_ready(model_f32.forward(x))

    ref = x
    for (w, b, _) in blocks:
        ref = ref + jnp.maximum(ref @ w + b, 0.0)
    assert out.shape == (M, K)
    assert jnp.allclose(out, ref, atol=1e-4, rtol=1e-4)

    # --- bf16-matmul path (the fast configuration on v5e/v6e/v7x) ----------
    model_bf16 = ResNetPallas(*blocks, compute_dtype=jnp.bfloat16)
    out_bf = jax.block_until_ready(model_bf16.forward(x))

    ref_bf = x
    for (w, b, _) in blocks:
        y = jnp.dot(ref_bf.astype(jnp.bfloat16), w.astype(jnp.bfloat16),
                    preferred_element_type=jnp.float32) + b
        ref_bf = ref_bf + jnp.maximum(y, 0.0)
    assert jnp.allclose(out_bf, ref_bf, atol=2e-2, rtol=2e-2)

    # --- ragged-M path (exercises the row-padding fallback) ----------------
    key, kr = jax.random.split(key)
    x_r = jax.random.normal(kr, (100, K), jnp.float32)
    out_r = jax.block_until_ready(model_f32.forward(x_r))
    ref_r = x_r
    for (w, b, _) in blocks:
        ref_r = ref_r + jnp.maximum(ref_r @ w + b, 0.0)
    assert out_r.shape == (100, K)
    assert jnp.allclose(out_r, ref_r, atol=1e-4, rtol=1e-4)

    print("KERNEL_OK")
</pallas_src>

<mosaic_0001>
module attributes {stable_mosaic.version = 11 : i64} {
  func.func @_res_chain_kernel(%arg0: i32, %arg1: memref<128x128xf32, #tpu.memory_space<vmem>>, %arg2: memref<3x128x128xf32, #tpu.memory_space<vmem>>, %arg3: memref<3x1x128xf32, #tpu.memory_space<vmem>>, %arg4: memref<128x128xf32, #tpu.memory_space<vmem>>) attributes {dimension_semantics = [#tpu.dimension_semantics<parallel>], iteration_bounds = array<i64: 2>, scalar_prefetch = 0 : i64, scratch_operands = 0 : i64, tpu.core_type = #tpu.core_type<tc>, window_params = [{transform_indices = @transform_0, window_bounds = array<i64: 128, 128>}, {pipeline_mode = #tpu.pipeline_mode<synchronous>, transform_indices = @transform_1, window_bounds = array<i64: 3, 128, 128>}, {pipeline_mode = #tpu.pipeline_mode<synchronous>, transform_indices = @transform_2, window_bounds = array<i64: 3, 1, 128>}, {transform_indices = @transform_3, window_bounds = array<i64: 128, 128>}]} {
    %c0 = arith.constant 0 : index
    %c0_0 = arith.constant 0 : index
    %0 = vector.load %arg1[%c0, %c0_0] : memref<128x128xf32, #tpu.memory_space<vmem>>, vector<128x128xf32>
    %c0_i32 = arith.constant 0 : i32
    %1 = arith.index_cast %c0_i32 : i32 to index
    %c0_1 = arith.constant 0 : index
    %c0_2 = arith.constant 0 : index
    %2 = vector.load %arg2[%1, %c0_1, %c0_2] : memref<3x128x128xf32, #tpu.memory_space<vmem>>, vector<1x128x128xf32>
    %3 = vector.shape_cast %2 : vector<1x128x128xf32> to vector<128x128xf32>
    %cst = arith.constant dense<0.000000e+00> : vector<128x128xf32>
    %4 = tpu.matmul %0, %3, %cst {dimension_numbers = #tpu.dot_dimension_numbers<[1], [0], [0], [1], [0, 0, 1, 1], [], []>} : vector<128x128xf32>, vector<128x128xf32>, vector<128x128xf32> -> vector<128x128xf32>
    %5 = arith.index_cast %c0_i32 : i32 to index
    %c0_3 = arith.constant 0 : index
    %c0_4 = arith.constant 0 : index
    %6 = vector.load %arg3[%5, %c0_3, %c0_4] : memref<3x1x128xf32, #tpu.memory_space<vmem>>, vector<1x1x128xf32>
    %7 = vector.shape_cast %6 : vector<1x1x128xf32> to vector<1x128xf32>
    %8 = vector.broadcast %7 : vector<1x128xf32> to vector<128x128xf32>
    %9 = arith.addf %4, %8 : vector<128x128xf32>
    %cst_5 = arith.constant 0.000000e+00 : f32
    %10 = vector.broadcast %cst_5 : f32 to vector<128x128xf32>
    %11 = arith.maximumf %9, %10 : vector<128x128xf32>
    %12 = arith.addf %0, %11 : vector<128x128xf32>
    %c1_i32 = arith.constant 1 : i32
    %13 = arith.index_cast %c1_i32 : i32 to index
    %c0_6 = arith.constant 0 : index
    %c0_7 = arith.constant 0 : index
    %14 = vector.load %arg2[%13, %c0_6, %c0_7] : memref<3x128x128xf32, #tpu.memory_space<vmem>>, vector<1x128x128xf32>
    %15 = vector.shape_cast %14 : vector<1x128x128xf32> to vector<128x128xf32>
    %cst_8 = arith.constant dense<0.000000e+00> : vector<128x128xf32>
    %16 = tpu.matmul %12, %15, %cst_8 {dimension_numbers = #tpu.dot_dimension_numbers<[1], [0], [0], [1], [0, 0, 1, 1], [], []>} : vector<128x128xf32>, vector<128x128xf32>, vector<128x128xf32> -> vector<128x128xf32>
    %17 = arith.index_cast %c1_i32 : i32 to index
    %c0_9 = arith.constant 0 : index
    %c0_10 = arith.constant 0 : index
    %18 = vector.load %arg3[%17, %c0_9, %c0_10] : memref<3x1x128xf32, #tpu.memory_space<vmem>>, vector<1x1x128xf32>
    %19 = vector.shape_cast %18 : vector<1x1x128xf32> to vector<1x128xf32>
    %20 = vector.broadcast %19 : vector<1x128xf32> to vector<128x128xf32>
    %21 = arith.addf %16, %20 : vector<128x128xf32>
    %cst_11 = arith.constant 0.000000e+00 : f32
    %22 = vector.broadcast %cst_11 : f32 to vector<128x128xf32>
    %23 = arith.maximumf %21, %22 : vector<128x128xf32>
    %24 = arith.addf %12, %23 : vector<128x128xf32>
    %c2_i32 = arith.constant 2 : i32
    %25 = arith.index_cast %c2_i32 : i32 to index
    %c0_12 = arith.constant 0 : index
    %c0_13 = arith.constant 0 : index
    %26 = vector.load %arg2[%25, %c0_12, %c0_13] : memref<3x128x128xf32, #tpu.memory_space<vmem>>, vector<1x128x128xf32>
    %27 = vector.shape_cast %26 : vector<1x128x128xf32> to vector<128x128xf32>
    %cst_14 = arith.constant dense<0.000000e+00> : vector<128x128xf32>
    %28 = tpu.matmul %24, %27, %cst_14 {dimension_numbers = #tpu.dot_dimension_numbers<[1], [0], [0], [1], [0, 0, 1, 1], [], []>} : vector<128x128xf32>, vector<128x128xf32>, vector<128x128xf32> -> vector<128x128xf32>
    %29 = arith.index_cast %c2_i32 : i32 to index
    %c0_15 = arith.constant 0 : index
    %c0_16 = arith.constant 0 : index
    %30 = vector.load %arg3[%29, %c0_15, %c0_16] : memref<3x1x128xf32, #tpu.memory_space<vmem>>, vector<1x1x128xf32>
    %31 = vector.shape_cast %30 : vector<1x1x128xf32> to vector<1x128xf32>
    %32 = vector.broadcast %31 : vector<1x128xf32> to vector<128x128xf32>
    %33 = arith.addf %28, %32 : vector<128x128xf32>
    %cst_17 = arith.constant 0.000000e+00 : f32
    %34 = vector.broadcast %cst_17 : f32 to vector<128x128xf32>
    %35 = arith.maximumf %33, %34 : vector<128x128xf32>
    %36 = arith.addf %24, %35 : vector<128x128xf32>
    %c3_i32 = arith.constant 3 : i32
    %c0_18 = arith.constant 0 : index
    %c0_19 = arith.constant 0 : index
    %37 = vector.load %arg4[%c0_18, %c0_19] : memref<128x128xf32, #tpu.memory_space<vmem>>, vector<128x128xf32>
    tpu.vector_store %arg4[%c0_18, %c0_19], %36 {strides = array<i32>} : memref<128x128xf32, #tpu.memory_space<vmem>>, vector<128x128xf32>,
    return
  }
  func.func @transform_0(%arg0: i32) -> (i32, i32) {
    %c0_i32 = arith.constant 0 : i32
    %c0_i32_0 = arith.constant 0 : i32
    return %arg0, %c0_i32 : i32, i32
  }
  func.func @transform_1(%arg0: i32) -> (i32, i32, i32) {
    %c0_i32 = arith.constant 0 : i32
    %c0_i32_0 = arith.constant 0 : i32
    %c0_i32_1 = arith.constant 0 : i32
    %c0_i32_2 = arith.constant 0 : i32
    return %c0_i32, %c0_i32_0, %c0_i32_1 : i32, i32, i32
  }
  func.func @transform_2(%arg0: i32) -> (i32, i32, i32) {
    %c0_i32 = arith.constant 0 : i32
    %c0_i32_0 = arith.constant 0 : i32
    %c0_i32_1 = arith.constant 0 : i32
    %c0_i32_2 = arith.constant 0 : i32
    return %c0_i32, %c0_i32_0, %c0_i32_1 : i32, i32, i32
  }
  func.func @transform_3(%arg0: i32) -> (i32, i32) {
    %c0_i32 = arith.constant 0 : i32
    %c0_i32_0 = arith.constant 0 : i32
    return %arg0, %c0_i32 : i32, i32
  }
}

</mosaic_0001>

<llo_original>
// kernel: tpu_custom_call.1
$region0: #{tpu_custom_call.1}
  #allocation0 [shape = 'u32[]', space=smem, size = 0x4, offset = 0x4, fixed_abs, tag = 'smem constant byte address 0x4 - core index']
  #allocation1 [shape = 'u32[72,128]{1,0:T(1,128)}', space=vmem, size = 0x9000, scoped, tag = 'internal scratch']
  %s0 = inlined_call_operand.hbm [shape: f32[256,128], index: 0, kind: input, shape index: {}]
  %s1 = inlined_call_operand.hbm [shape: f32[3,128,128], index: 1, kind: input, shape index: {}]
  %s2 = inlined_call_operand.hbm [shape: f32[3,1,128], index: 2, kind: input, shape index: {}]
  %s3 = inlined_call_operand.hbm [shape: f32[256,128], index: 3, kind: output, shape index: {}]
  %s4 = sld [smem:[#allocation0]]
  $region57: #{tpu_custom_call.1} parent=0
    _
  %s6 = ssub.s32 1, %s4
  %s7 = scalar_select 0, %s6, %s4
  $region1: #{tpu_custom_call.1} parent=0
    #allocation2 [shape = 'u8[131072]{0}', space=vmem, size = 0x20000, scoped, tag = 'input window, operand 0']
    #allocation3 [shape = 's32[2]{0}', space=sflag, size = 0x8, scoped, tag = 'scoped memory for tpu_custom_call.1']
    #allocation4 [shape = 's32[2]{0}', space=sflag, size = 0x8, scoped, tag = 'scoped memory for tpu_custom_call.1']
    #allocation5 [shape = 'u8[196608]{0}', space=vmem, size = 0x30000, scoped, tag = 'input window, operand 1, single buffered']
    #allocation6 [shape = 's32[1]{0}', space=sflag, size = 0x4, scoped, tag = 'scoped memory for tpu_custom_call.1']
    #allocation7 [shape = 'u8[1536]{0}', space=vmem, size = 0x800, scoped, tag = 'input window, operand 2, single buffered']
    #allocation8 [shape = 'u8[131072]{0}', space=vmem, size = 0x20000, scoped, tag = 'output window, operand 0']
    %8 = vsyncpa [#allocation3], 0
    %s9 = scalar_lea.sflag [#allocation3], 1
    %10 = vsyncpa %s9, 0
    %11 = vsyncpa [#allocation6], 0
    %12 = vsyncpa [#allocation4], 0
    %s13 = scalar_lea.sflag [#allocation4], 1
    %14 = vsyncpa %s13, 0
    loop: start=0, step=1, limit=4
    $region2: #{tpu_custom_call.1} parent=1 // loop_pre_header
      _
    $region3: #{tpu_custom_call.1} parent=1 // loop_header
      %s16 = sphi 0, %s20
      %p17 = scmp.ge.s32.totalorder %s16, 4
      %s26 = sphi 0, %s28
      %s29 = sphi 0, %s26
      %s30 = sphi 0, %s29
      %s46 = sphi 0, %s30
      %s50 = sphi 0, %s50
      %s52 = sphi 0, %s50
      %s53 = sphi 0, %s52
      %s67 = sphi 0, %s53
      %s71 = sphi 0, %s71
      %s73 = sphi 0, %s71
      %s74 = sphi 0, %s73
      %s88 = sphi 0, %s74
      %s94 = sphi 0, %s96
      %s97 = sphi 0, %s94
      %s98 = sphi 0, %s97
      %s114 = sphi 0, %s98
    $region4: #{tpu_custom_call.1} parent=1 // loop_header_branch
      %19 = sbr.rel (%p17) target = $region8
    $region5: #{tpu_custom_call.1} parent=1 // loop_body
      %s21 = ssub.s32 %s16, 1
      %s22 = ssub.s32 %s16, 2
      %s23 = sadd.s32 %s16, 1
      %s24 = ssub.s32 %s16, %s23
      %p25 = scmp.eq.s32.totalorder %s24, 0
      %s27 = sadd.s32 %s26, 1
      %s28 = scalar_select %p25, %s26, %s27
      %p31 = pneg %p25
      %p32 = scmp.eq.s32.totalorder %s16, 1
      %p33 = por %p31, %p32
      %p34 = scmp.ne.s32.totalorder %s26, %s29
      %p35 = scmp.eq.s32.totalorder %s16, 0
      %p36 = por %p34, %p35
      %p37 = scmp.ne.s32.totalorder %s26, %s29
      %p38 = scmp.eq.s32.totalorder %s21, 1
      %p39 = por %p37, %p38
      %p40 = scmp.ne.s32.totalorder %s29, %s30
      %p41 = scmp.eq.s32.totalorder %s21, 0
      %p42 = por %p40, %p41
      %p43 = scmp.ne.s32.totalorder %s29, %s30
      %p44 = scmp.eq.s32.totalorder %s22, 1
      %p45 = por %p43, %p44
      %p47 = scmp.ne.s32.totalorder %s30, %s46
      %p48 = scmp.eq.s32.totalorder %s22, 0
      %p49 = por %p47, %p48
      %s51 = sadd.s32 %s50, 1
      %p54 = scmp.eq.s32.totalorder %s16, 1
      %p55 = scmp.ne.s32.totalorder %s50, %s52
      %p56 = scmp.eq.s32.totalorder %s16, 0
      %p57 = por %p55, %p56
      %p58 = scmp.ne.s32.totalorder %s50, %s52
      %p59 = scmp.eq.s32.totalorder %s21, 1
      %p60 = por %p58, %p59
      %p61 = scmp.ne.s32.totalorder %s52, %s53
      %p62 = scmp.eq.s32.totalorder %s21, 0
      %p63 = por %p61, %p62
      %p64 = scmp.ne.s32.totalorder %s52, %s53
      %p65 = scmp.eq.s32.totalorder %s22, 1
      %p66 = por %p64, %p65
      %p68 = scmp.ne.s32.totalorder %s53, %s67
      %p69 = scmp.eq.s32.totalorder %s22, 0
      %p70 = por %p68, %p69
      %s72 = sadd.s32 %s71, 1
      %p75 = scmp.eq.s32.totalorder %s16, 1
      %p76 = scmp.ne.s32.totalorder %s71, %s73
      %p77 = scmp.eq.s32.totalorder %s16, 0
      %p78 = por %p76, %p77
      %p79 = scmp.ne.s32.totalorder %s71, %s73
      %p80 = scmp.eq.s32.totalorder %s21, 1
      %p81 = por %p79, %p80
      %p82 = scmp.ne.s32.totalorder %s73, %s74
      %p83 = scmp.eq.s32.totalorder %s21, 0
      %p84 = por %p82, %p83
      %p85 = scmp.ne.s32.totalorder %s73, %s74
      %p86 = scmp.eq.s32.totalorder %s22, 1
      %p87 = por %p85, %p86
      %p89 = scmp.ne.s32.totalorder %s74, %s88
      %p90 = scmp.eq.s32.totalorder %s22, 0
      %p91 = por %p89, %p90
      %s92 = ssub.s32 %s16, %s23
      %p93 = scmp.eq.s32.totalorder %s92, 0
      %s95 = sadd.s32 %s94, 1
      %s96 = scalar_select %p93, %s94, %s95
      %p99 = pneg %p93
      %p100 = scmp.eq.s32.totalorder %s16, 1
      %p101 = por %p99, %p100
      %p102 = scmp.ne.s32.totalorder %s94, %s97
      %p103 = scmp.eq.s32.totalorder %s16, 0
      %p104 = por %p102, %p103
      %p105 = scmp.ne.s32.totalorder %s94, %s97
      %p106 = scmp.eq.s32.totalorder %s21, 1
      %p107 = por %p105, %p106
      %p108 = scmp.ne.s32.totalorder %s97, %s98
      %p109 = scmp.eq.s32.totalorder %s21, 0
      %p110 = por %p108, %p109
      %p111 = scmp.ne.s32.totalorder %s97, %s98
      %p112 = scmp.eq.s32.totalorder %s22, 1
      %p113 = por %p111, %p112
      %p115 = scmp.ne.s32.totalorder %s98, %s114
      %p116 = scmp.eq.s32.totalorder %s22, 0
      %p117 = por %p115, %p116
      %p118 = scmp.le.s32.totalorder 1, %s16
      %p119 = scmp.lt.s32.totalorder %s16, 3
      %p120 = pnand %p118, %p119
      %p121 = pneg %p120
      // Predicated region
      $region9: #{tpu_custom_call.1} parent=5 // pred_check
        _
      $region10: #{tpu_custom_call.1} parent=5 // pred_check_branch
        %123 = sbr.rel (%p120) target = $region12
      $region11: #{tpu_custom_call.1} parent=5 // pred_region
        %s124 = ssub.s32 %s16, 1
        // Predicated region
        $region13: #{tpu_custom_call.1} parent=11 // pred_check
          %p125 = pneg %p63
        $region14: #{tpu_custom_call.1} parent=11 // pred_check_branch
          %127 = sbr.rel (%p125) target = $region16
        $region15: #{tpu_custom_call.1} parent=11 // pred_region
          %129 = vsyncadd [#allocation6], 0
          %s130 = sshll.u32 %s1, 4
          %s131 = int_to_ptr.hbm [resolvable:$true] %s130
          %s132 = sshll.u32 [#allocation5], 4
          %s133 = int_to_ptr.vmem [resolvable:$true] %s132
          %138 = dma.hbm_to_vmem [thread:$0]  %s131, 6144, %s133, [#allocation6], 128, 128, 8
        $region16: #{tpu_custom_call.1} parent=11 // pred_fallthru
          _
        // Predicated region
        $region17: #{tpu_custom_call.1} parent=11 // pred_check
          %p139 = pneg %p84
        $region18: #{tpu_custom_call.1} parent=11 // pred_check_branch
          %141 = sbr.rel (%p139) target = $region20
        $region19: #{tpu_custom_call.1} parent=11 // pred_region
          %143 = vsyncadd [#allocation6], 0
          %s144 = sshll.u32 %s2, 4
          %s145 = int_to_ptr.hbm [resolvable:$true] %s144
          %s146 = sshll.u32 [#allocation7], 4
          %s147 = int_to_ptr.vmem [resolvable:$true] %s146
          %152 = dma.hbm_to_vmem [thread:$0]  %s145, 48, %s147, [#allocation6], 16, 16, 1
        $region20: #{tpu_custom_call.1} parent=11 // pred_fallthru
          _
      $region12: #{tpu_custom_call.1} parent=5 // pred_fallthru
        _
      %p153 = scmp.lt.s32.totalorder %s16, 2
      // Predicated region
      $region21: #{tpu_custom_call.1} parent=5 // pred_check
        %p154 = pneg %p153
      $region22: #{tpu_custom_call.1} parent=5 // pred_check_branch
        %156 = sbr.rel (%p154) target = $region24
      $region23: #{tpu_custom_call.1} parent=5 // pred_region
        // Predicated region
        $region25: #{tpu_custom_call.1} parent=23 // pred_check
          %p157 = pneg %p36
        $region26: #{tpu_custom_call.1} parent=23 // pred_check_branch
          %159 = sbr.rel (%p157) target = $region28
        $region27: #{tpu_custom_call.1} parent=23 // pred_region
          %s160 = sand.u32 %s26, 1
          %s161 = scalar_lea.sflag [#allocation3], %s160
          %s162 = sand.u32 %s26, 1
          %s163 = smul.addr %s162, 128
          %s164 = scalar_lea.vmem [#allocation2], %s163
          %s165 = smul.u32 16, %s16
          %167 = vsyncadd %s161, 0
          %s168 = smul.addr %s165, 8
          %s169 = scalar_lea.hbm %s0, %s168
          %s170 = sshll.u32 %s169, 4
          %s171 = int_to_ptr.hbm [resolvable:$true] %s170
          %s172 = sshll.u32 %s164, 4
          %s173 = int_to_ptr.vmem [resolvable:$true] %s172
          %178 = dma.hbm_to_vmem [thread:$0]  %s171, 2048, %s173, %s161, 128, 128, 8
        $region28: #{tpu_custom_call.1} parent=23 // pred_fallthru
          _
      $region24: #{tpu_custom_call.1} parent=5 // pred_fallthru
        _
      %p179 = scmp.le.s32.totalorder 1, %s16
      %p180 = scmp.lt.s32.totalorder %s16, 3
      %p181 = pnand %p179, %p180
      %p182 = pneg %p181
      // Predicated region
      $region29: #{tpu_custom_call.1} parent=5 // pred_check
        _
      $region30: #{tpu_custom_call.1} parent=5 // pred_check_branch
        %184 = sbr.rel (%p181) target = $region32
      $region31: #{tpu_custom_call.1} parent=5 // pred_region
        %s185 = ssub.s32 %s16, 1
        %s186 = sand.u32 %s29, 1
        %s187 = scalar_lea.sflag [#allocation3], %s186
        %s188 = sand.u32 %s29, 1
        %s189 = smul.addr %s188, 128
        %s190 = scalar_lea.vmem [#allocation2], %s189
        // Predicated region
        $region33: #{tpu_custom_call.1} parent=31 // pred_check
          %p191 = pneg %p42
        $region34: #{tpu_custom_call.1} parent=31 // pred_check_branch
          %193 = sbr.rel (%p191) target = $region36
        $region35: #{tpu_custom_call.1} parent=31 // pred_region
          %195 = dma.done %s187, 2048
        $region36: #{tpu_custom_call.1} parent=31 // pred_fallthru
          _
        // Predicated region
        $region37: #{tpu_custom_call.1} parent=31 // pred_check
          %p196 = pneg %p63
        $region38: #{tpu_custom_call.1} parent=31 // pred_check_branch
          %198 = sbr.rel (%p196) target = $region40
        $region39: #{tpu_custom_call.1} parent=31 // pred_region
          %200 = dma.done [#allocation6], 6144
        $region40: #{tpu_custom_call.1} parent=31 // pred_fallthru
          _
        // Predicated region
        $region41: #{tpu_custom_call.1} parent=31 // pred_check
          %p201 = pneg %p84
        $region42: #{tpu_custom_call.1} parent=31 // pred_check_branch
          %203 = sbr.rel (%p201) target = $region44
        $region43: #{tpu_custom_call.1} parent=31 // pred_region
          %205 = dma.done [#allocation6], 48
        $region44: #{tpu_custom_call.1} parent=31 // pred_fallthru
          _
        %s206 = sand.u32 %s29, 1
        %s207 = scalar_lea.sflag [#allocation3], %s206
        %s208 = sand.u32 %s29, 1
        %s209 = smul.addr %s208, 128
        %s210 = scalar_lea.vmem [#allocation2], %s209
        %p211 = pneg %p42
        %p212 = pneg %p39
        %p213 = pneg %p63
        %p214 = pneg %p60
        %p215 = pneg %p84
        %p216 = pneg %p81
        %p217 = pneg %p110
        %p218 = pneg %p107
        %s219 = sand.u32 %s97, 1
        %s220 = scalar_lea.sflag [#allocation4], %s219
        %s221 = sand.u32 %s97, 1
        %s222 = smul.addr %s221, 128
        %s223 = scalar_lea.vmem [#allocation8], %s222
        %s224 = smul.u32 16, %s21
        %s225 = smul.u32 16, %s21
        %v226 = vld [vmem:[%s190] sm:$0xff]
        %v227 = vld [vmem:[%s190 + $0x8] sm:$0xff]
        %v228 = vld [vmem:[%s190 + $0x10] sm:$0xff]
        %v229 = vld [vmem:[%s190 + $0x18] sm:$0xff]
        %v230 = vld [vmem:[%s190 + $0x20] sm:$0xff]
        %v231 = vld [vmem:[%s190 + $0x28] sm:$0xff]
        %v232 = vld [vmem:[%s190 + $0x30] sm:$0xff]
        %v233 = vld [vmem:[%s190 + $0x38] sm:$0xff]
        %v234 = vld [vmem:[%s190 + $0x40] sm:$0xff]
        %v235 = vld [vmem:[%s190 + $0x48] sm:$0xff]
        %v236 = vld [vmem:[%s190 + $0x50] sm:$0xff]
        %v237 = vld [vmem:[%s190 + $0x58] sm:$0xff]
        %v238 = vld [vmem:[%s190 + $0x60] sm:$0xff]
        %v239 = vld [vmem:[%s190 + $0x68] sm:$0xff]
        %v240 = vld [vmem:[%s190 + $0x70] sm:$0xff]
        %v241 = vld [vmem:[%s190 + $0x78] sm:$0xff]
        %v242 = vld [vmem:[#allocation5] sm:$0xff]
        %v243 = vld [vmem:[#allocation5 + $0x8] sm:$0xff]
        %v244 = vld [vmem:[#allocation5 + $0x10] sm:$0xff]
        %v245 = vld [vmem:[#allocation5 + $0x18] sm:$0xff]
        %v246 = vld [vmem:[#allocation5 + $0x20] sm:$0xff]
        %v247 = vld [vmem:[#allocation5 + $0x28] sm:$0xff]
        %v248 = vld [vmem:[#allocation5 + $0x30] sm:$0xff]
        %v249 = vld [vmem:[#allocation5 + $0x38] sm:$0xff]
        %v250 = vld [vmem:[#allocation5 + $0x40] sm:$0xff]
        %v251 = vld [vmem:[#allocation5 + $0x48] sm:$0xff]
        %v252 = vld [vmem:[#allocation5 + $0x50] sm:$0xff]
        %v253 = vld [vmem:[#allocation5 + $0x58] sm:$0xff]
        %v254 = vld [vmem:[#allocation5 + $0x60] sm:$0xff]
        %v255 = vld [vmem:[#allocation5 + $0x68] sm:$0xff]
        %v256 = vld [vmem:[#allocation5 + $0x70] sm:$0xff]
        %v257 = vld [vmem:[#allocation5 + $0x78] sm:$0xff]
        %v258 = vld [vmem:[#allocation7] sm:$0x1]
        %v260 = vperm.slane %v258, 0
        %262 = vmatpush.msra.mxu0 %v257
        %263 = vmatpush.msra.mxu0 %v256
        %264 = vmatpush.msra.mxu0 %v255
        %265 = vmatpush.msra.mxu0 %v254
        %266 = vmatpush.msra.mxu0 %v253
        %267 = vmatpush.msra.mxu0 %v252
        %268 = vmatpush.msra.mxu0 %v251
        %269 = vmatpush.msra.mxu0 %v250
        %270 = vmatpush.msra.mxu0 %v249
        %271 = vmatpush.msra.mxu0 %v248
        %272 = vmatpush.msra.mxu0 %v247
        %273 = vmatpush.msra.mxu0 %v246
        %274 = vmatpush.msra.mxu0 %v245
        %275 = vmatpush.msra.mxu0 %v244
        %276 = vmatpush.msra.mxu0 %v243
        %277 = vmatpush.msra.mxu0 %v242
        %278 = vmatmul.f32.gmra.mxu0 %v226
        %v279 = vpop.f32.mrf.mxu0
        %v280 = vadd.f32 %v260, %v279
        %281 = vmatmul.f32.gmra.mxu0 %v227
        %v282 = vpop.f32.mrf.mxu0
        %v283 = vadd.f32 %v260, %v282
        %284 = vmatmul.f32.gmra.mxu0 %v228
        %v285 = vpop.f32.mrf.mxu0
        %v286 = vadd.f32 %v260, %v285
        %287 = vmatmul.f32.gmra.mxu0 %v229
        %v288 = vpop.f32.mrf.mxu0
        %v289 = vadd.f32 %v260, %v288
        %290 = vmatmul.f32.gmra.mxu0 %v230
        %v291 = vpop.f32.mrf.mxu0
        %v292 = vadd.f32 %v260, %v291
        %293 = vmatmul.f32.gmra.mxu0 %v231
        %v294 = vpop.f32.mrf.mxu0
        %v295 = vadd.f32 %v260, %v294
        %296 = vmatmul.f32.gmra.mxu0 %v232
        %v297 = vpop.f32.mrf.mxu0
        %v298 = vadd.f32 %v260, %v297
        %299 = vmatmul.f32.gmra.mxu0 %v233
        %v300 = vpop.f32.mrf.mxu0
        %v301 = vadd.f32 %v260, %v300
        %302 = vmatmul.f32.gmra.mxu0 %v234
        %v303 = vpop.f32.mrf.mxu0
        %v304 = vadd.f32 %v260, %v303
        %305 = vmatmul.f32.gmra.mxu0 %v235
        %v306 = vpop.f32.mrf.mxu0
        %v307 = vadd.f32 %v260, %v306
        %308 = vmatmul.f32.gmra.mxu0 %v236
        %v309 = vpop.f32.mrf.mxu0
        %v310 = vadd.f32 %v260, %v309
        %311 = vmatmul.f32.gmra.mxu0 %v237
        %v312 = vpop.f32.mrf.mxu0
        %v313 = vadd.f32 %v260, %v312
        %314 = vmatmul.f32.gmra.mxu0 %v238
        %v315 = vpop.f32.mrf.mxu0
        %v316 = vadd.f32 %v260, %v315
        %317 = vmatmul.f32.gmra.mxu0 %v239
        %v318 = vpop.f32.mrf.mxu0
        %v319 = vadd.f32 %v260, %v318
        %320 = vmatmul.f32.gmra.mxu0 %v240
        %v321 = vpop.f32.mrf.mxu0
        %v322 = vadd.f32 %v260, %v321
        %323 = vmatmul.f32.gmra.mxu0 %v241
        %v324 = vpop.f32.mrf.mxu0
        %v325 = vadd.f32 %v260, %v324
        %326 = vdwg.mxu0
        %v327 = vmax.f32 %v280, 0.0
        %v328 = vmax.f32 %v283, 0.0
        %v329 = vmax.f32 %v286, 0.0
        %v330 = vmax.f32 %v289, 0.0
        %v331 = vmax.f32 %v292, 0.0
        %v332 = vmax.f32 %v295, 0.0
        %v333 = vmax.f32 %v298, 0.0
        %v334 = vmax.f32 %v301, 0.0
        %v335 = vmax.f32 %v304, 0.0
        %v336 = vmax.f32 %v307, 0.0
        %v337 = vmax.f32 %v310, 0.0
        %v338 = vmax.f32 %v313, 0.0
        %v339 = vmax.f32 %v316, 0.0
        %v340 = vmax.f32 %v319, 0.0
        %v341 = vmax.f32 %v322, 0.0
        %v342 = vmax.f32 %v325, 0.0
        %v343 = vadd.f32 %v226, %v327
        %v344 = vadd.f32 %v227, %v328
        %v345 = vadd.f32 %v228, %v329
        %v346 = vadd.f32 %v229, %v330
        %v347 = vadd.f32 %v230, %v331
        %v348 = vadd.f32 %v231, %v332
        %v349 = vadd.f32 %v232, %v333
        %v350 = vadd.f32 %v233, %v334
        %v351 = vadd.f32 %v234, %v335
        %v352 = vadd.f32 %v235, %v336
        %v353 = vadd.f32 %v236, %v337
        %v354 = vadd.f32 %v237, %v338
        %v355 = vadd.f32 %v238, %v339
        %v356 = vadd.f32 %v239, %v340
        %v357 = vadd.f32 %v240, %v341
        %v358 = vadd.f32 %v241, %v342
        %s359 = scalar_lea.vmem [#allocation5], 128
        %v360 = vld [vmem:[%s359] sm:$0xff]
        %v361 = vld [vmem:[%s359 + $0x8] sm:$0xff]
        %v362 = vld [vmem:[%s359 + $0x10] sm:$0xff]
        %v363 = vld [vmem:[%s359 + $0x18] sm:$0xff]
        %v364 = vld [vmem:[%s359 + $0x20] sm:$0xff]
        %v365 = vld [vmem:[%s359 + $0x28] sm:$0xff]
        %v366 = vld [vmem:[%s359 + $0x30] sm:$0xff]
        %v367 = vld [vmem:[%s359 + $0x38] sm:$0xff]
        %v368 = vld [vmem:[%s359 + $0x40] sm:$0xff]
        %v369 = vld [vmem:[%s359 + $0x48] sm:$0xff]
        %v370 = vld [vmem:[%s359 + $0x50] sm:$0xff]
        %v371 = vld [vmem:[%s359 + $0x58] sm:$0xff]
        %v372 = vld [vmem:[%s359 + $0x60] sm:$0xff]
        %v373 = vld [vmem:[%s359 + $0x68] sm:$0xff]
        %v374 = vld [vmem:[%s359 + $0x70] sm:$0xff]
        %v375 = vld [vmem:[%s359 + $0x78] sm:$0xff]
        %s376 = scalar_lea.vmem [#allocation7], 1
        %v377 = vld [vmem:[%s376] sm:$0x1]
        %v379 = vperm.slane %v377, 0
        %381 = vmatpush.msra.mxu0 %v375
        %382 = vmatpush.msra.mxu0 %v374
        %383 = vmatpush.msra.mxu0 %v373
        %384 = vmatpush.msra.mxu0 %v372
        %385 = vmatpush.msra.mxu0 %v371
        %386 = vmatpush.msra.mxu0 %v370
        %387 = vmatpush.msra.mxu0 %v369
        %388 = vmatpush.msra.mxu0 %v368
        %389 = vmatpush.msra.mxu0 %v367
        %390 = vmatpush.msra.mxu0 %v366
        %391 = vmatpush.msra.mxu0 %v365
        %392 = vmatpush.msra.mxu0 %v364
        %393 = vmatpush.msra.mxu0 %v363
        %394 = vmatpush.msra.mxu0 %v362
        %395 = vmatpush.msra.mxu0 %v361
        %396 = vmatpush.msra.mxu0 %v360
        %397 = vmatmul.f32.gmra.mxu0 %v343
        %v398 = vpop.f32.mrf.mxu0
        %v399 = vadd.f32 %v379, %v398
        %400 = vmatmul.f32.gmra.mxu0 %v344
        %v401 = vpop.f32.mrf.mxu0
        %v402 = vadd.f32 %v379, %v401
        %403 = vmatmul.f32.gmra.mxu0 %v345
        %v404 = vpop.f32.mrf.mxu0
        %v405 = vadd.f32 %v379, %v404
        %406 = vmatmul.f32.gmra.mxu0 %v346
        %v407 = vpop.f32.mrf.mxu0
        %v408 = vadd.f32 %v379, %v407
        %409 = vmatmul.f32.gmra.mxu0 %v347
        %v410 = vpop.f32.mrf.mxu0
        %v411 = vadd.f32 %v379, %v410
        %412 = vmatmul.f32.gmra.mxu0 %v348
        %v413 = vpop.f32.mrf.mxu0
        %v414 = vadd.f32 %v379, %v413
        %415 = vmatmul.f32.gmra.mxu0 %v349
        %v416 = vpop.f32.mrf.mxu0
        %v417 = vadd.f32 %v379, %v416
        %418 = vmatmul.f32.gmra.mxu0 %v350
        %v419 = vpop.f32.mrf.mxu0
        %v420 = vadd.f32 %v379, %v419
        %421 = vmatmul.f32.gmra.mxu0 %v351
        %v422 = vpop.f32.mrf.mxu0
        %v423 = vadd.f32 %v379, %v422
        %424 = vmatmul.f32.gmra.mxu0 %v352
        %v425 = vpop.f32.mrf.mxu0
        %v426 = vadd.f32 %v379, %v425
        %427 = vmatmul.f32.gmra.mxu0 %v353
        %v428 = vpop.f32.mrf.mxu0
        %v429 = vadd.f32 %v379, %v428
        %430 = vmatmul.f32.gmra.mxu0 %v354
        %v431 = vpop.f32.mrf.mxu0
        %v432 = vadd.f32 %v379, %v431
        %433 = vmatmul.f32.gmra.mxu0 %v355
        %v434 = vpop.f32.mrf.mxu0
        %v435 = vadd.f32 %v379, %v434
        %436 = vmatmul.f32.gmra.mxu0 %v356
        %v437 = vpop.f32.mrf.mxu0
        %v438 = vadd.f32 %v379, %v437
        %439 = vmatmul.f32.gmra.mxu0 %v357
        %v440 = vpop.f32.mrf.mxu0
        %v441 = vadd.f32 %v379, %v440
        %442 = vmatmul.f32.gmra.mxu0 %v358
        %v443 = vpop.f32.mrf.mxu0
        %v444 = vadd.f32 %v379, %v443
        %445 = vdwg.mxu0
        %v446 = vmax.f32 %v399, 0.0
        %v447 = vmax.f32 %v402, 0.0
        %v448 = vmax.f32 %v405, 0.0
        %v449 = vmax.f32 %v408, 0.0
        %v450 = vmax.f32 %v411, 0.0
        %v451 = vmax.f32 %v414, 0.0
        %v452 = vmax.f32 %v417, 0.0
        %v453 = vmax.f32 %v420, 0.0
        %v454 = vmax.f32 %v423, 0.0
        %v455 = vmax.f32 %v426, 0.0
        %v456 = vmax.f32 %v429, 0.0
        %v457 = vmax.f32 %v432, 0.0
        %v458 = vmax.f32 %v435, 0.0
        %v459 = vmax.f32 %v438, 0.0
        %v460 = vmax.f32 %v441, 0.0
        %v461 = vmax.f32 %v444, 0.0
        %v462 = vadd.f32 %v343, %v446
        %v463 = vadd.f32 %v344, %v447
        %v464 = vadd.f32 %v345, %v448
        %v465 = vadd.f32 %v346, %v449
        %v466 = vadd.f32 %v347, %v450
        %v467 = vadd.f32 %v348, %v451
        %v468 = vadd.f32 %v349, %v452
        %v469 = vadd.f32 %v350, %v453
        %v470 = vadd.f32 %v351, %v454
        %v471 = vadd.f32 %v352, %v455
        %v472 = vadd.f32 %v353, %v456
        %v473 = vadd.f32 %v354, %v457
        %v474 = vadd.f32 %v355, %v458
        %v475 = vadd.f32 %v356, %v459
        %v476 = vadd.f32 %v357, %v460
        %v477 = vadd.f32 %v358, %v461
        %s478 = scalar_lea.vmem [#allocation5], 256
        %v479 = vld [vmem:[%s478] sm:$0xff]
        %v480 = vld [vmem:[%s478 + $0x8] sm:$0xff]
        %v481 = vld [vmem:[%s478 + $0x10] sm:$0xff]
        %v482 = vld [vmem:[%s478 + $0x18] sm:$0xff]
        %v483 = vld [vmem:[%s478 + $0x20] sm:$0xff]
        %v484 = vld [vmem:[%s478 + $0x28] sm:$0xff]
        %v485 = vld [vmem:[%s478 + $0x30] sm:$0xff]
        %v486 = vld [vmem:[%s478 + $0x38] sm:$0xff]
        %v487 = vld [vmem:[%s478 + $0x40] sm:$0xff]
        %v488 = vld [vmem:[%s478 + $0x48] sm:$0xff]
        %v489 = vld [vmem:[%s478 + $0x50] sm:$0xff]
        %v490 = vld [vmem:[%s478 + $0x58] sm:$0xff]
        %v491 = vld [vmem:[%s478 + $0x60] sm:$0xff]
        %v492 = vld [vmem:[%s478 + $0x68] sm:$0xff]
        %v493 = vld [vmem:[%s478 + $0x70] sm:$0xff]
        %v494 = vld [vmem:[%s478 + $0x78] sm:$0xff]
        %s495 = scalar_lea.vmem [#allocation7], 2
        %v496 = vld [vmem:[%s495] sm:$0x1]
        %v498 = vperm.slane %v496, 0
        %500 = vmatpush.msra.mxu0 %v494
        %501 = vmatpush.msra.mxu0 %v493
        %502 = vmatpush.msra.mxu0 %v492
        %503 = vmatpush.msra.mxu0 %v491
        %504 = vmatpush.msra.mxu0 %v490
        %505 = vmatpush.msra.mxu0 %v489
        %506 = vmatpush.msra.mxu0 %v488
        %507 = vmatpush.msra.mxu0 %v487
        %508 = vmatpush.msra.mxu0 %v486
        %509 = vmatpush.msra.mxu0 %v485
        %510 = vmatpush.msra.mxu0 %v484
        %511 = vmatpush.msra.mxu0 %v483
        %512 = vmatpush.msra.mxu0 %v482
        %513 = vmatpush.msra.mxu0 %v481
        %514 = vmatpush.msra.mxu0 %v480
        %515 = vmatpush.msra.mxu0 %v479
        %516 = vmatmul.f32.gmra.mxu0 %v462
        %v517 = vpop.f32.mrf.mxu0
        %v518 = vadd.f32 %v498, %v517
        %519 = vmatmul.f32.gmra.mxu0 %v463
        %v520 = vpop.f32.mrf.mxu0
        %v521 = vadd.f32 %v498, %v520
        %522 = vmatmul.f32.gmra.mxu0 %v464
        %v523 = vpop.f32.mrf.mxu0
        %v524 = vadd.f32 %v498, %v523
        %525 = vmatmul.f32.gmra.mxu0 %v465
        %v526 = vpop.f32.mrf.mxu0
        %v527 = vadd.f32 %v498, %v526
        %528 = vmatmul.f32.gmra.mxu0 %v466
        %v529 = vpop.f32.mrf.mxu0
        %v530 = vadd.f32 %v498, %v529
        %531 = vmatmul.f32.gmra.mxu0 %v467
        %v532 = vpop.f32.mrf.mxu0
        %v533 = vadd.f32 %v498, %v532
        %534 = vmatmul.f32.gmra.mxu0 %v468
        %v535 = vpop.f32.mrf.mxu0
        %v536 = vadd.f32 %v498, %v535
        %537 = vmatmul.f32.gmra.mxu0 %v469
        %v538 = vpop.f32.mrf.mxu0
        %v539 = vadd.f32 %v498, %v538
        %540 = vmatmul.f32.gmra.mxu0 %v470
        %v541 = vpop.f32.mrf.mxu0
        %v542 = vadd.f32 %v498, %v541
        %543 = vmatmul.f32.gmra.mxu0 %v471
        %v544 = vpop.f32.mrf.mxu0
        %v545 = vadd.f32 %v498, %v544
        %546 = vmatmul.f32.gmra.mxu0 %v472
        %v547 = vpop.f32.mrf.mxu0
        %v548 = vadd.f32 %v498, %v547
        %549 = vmatmul.f32.gmra.mxu0 %v473
        %v550 = vpop.f32.mrf.mxu0
        %v551 = vadd.f32 %v498, %v550
        %552 = vmatmul.f32.gmra.mxu0 %v474
        %v553 = vpop.f32.mrf.mxu0
        %v554 = vadd.f32 %v498, %v553
        %555 = vmatmul.f32.gmra.mxu0 %v475
        %v556 = vpop.f32.mrf.mxu0
        %v557 = vadd.f32 %v498, %v556
        %558 = vmatmul.f32.gmra.mxu0 %v476
        %v559 = vpop.f32.mrf.mxu0
        %v560 = vadd.f32 %v498, %v559
        %561 = vmatmul.f32.gmra.mxu0 %v477
        %v562 = vpop.f32.mrf.mxu0
        %v563 = vadd.f32 %v498, %v562
        %564 = vdwg.mxu0
        %v565 = vmax.f32 %v518, 0.0
        %v566 = vmax.f32 %v521, 0.0
        %v567 = vmax.f32 %v524, 0.0
        %v568 = vmax.f32 %v527, 0.0
        %v569 = vmax.f32 %v530, 0.0
        %v570 = vmax.f32 %v533, 0.0
        %v571 = vmax.f32 %v536, 0.0
        %v572 = vmax.f32 %v539, 0.0
        %v573 = vmax.f32 %v542, 0.0
        %v574 = vmax.f32 %v545, 0.0
        %v575 = vmax.f32 %v548, 0.0
        %v576 = vmax.f32 %v551, 0.0
        %v577 = vmax.f32 %v554, 0.0
        %v578 = vmax.f32 %v557, 0.0
        %v579 = vmax.f32 %v560, 0.0
        %v580 = vmax.f32 %v563, 0.0
        %v581 = vadd.f32 %v462, %v565
        %v582 = vadd.f32 %v463, %v566
        %v583 = vadd.f32 %v464, %v567
        %v584 = vadd.f32 %v465, %v568
        %v585 = vadd.f32 %v466, %v569
        %v586 = vadd.f32 %v467, %v570
        %v587 = vadd.f32 %v468, %v571
        %v588 = vadd.f32 %v469, %v572
        %v589 = vadd.f32 %v470, %v573
        %v590 = vadd.f32 %v471, %v574
        %v591 = vadd.f32 %v472, %v575
        %v592 = vadd.f32 %v473, %v576
        %v593 = vadd.f32 %v474, %v577
        %v594 = vadd.f32 %v475, %v578
        %v595 = vadd.f32 %v476, %v579
        %v596 = vadd.f32 %v477, %v580
        %597 = vst [vmem:[%s223] sm:$0xff] %v581
        %598 = vst [vmem:[%s223 + $0x8] sm:$0xff] %v582
        %599 = vst [vmem:[%s223 + $0x10] sm:$0xff] %v583
        %600 = vst [vmem:[%s223 + $0x18] sm:$0xff] %v584
        %601 = vst [vmem:[%s223 + $0x20] sm:$0xff] %v585
        %602 = vst [vmem:[%s223 + $0x28] sm:$0xff] %v586
        %603 = vst [vmem:[%s223 + $0x30] sm:$0xff] %v587
        %604 = vst [vmem:[%s223 + $0x38] sm:$0xff] %v588
        %605 = vst [vmem:[%s223 + $0x40] sm:$0xff] %v589
        %606 = vst [vmem:[%s223 + $0x48] sm:$0xff] %v590
        %607 = vst [vmem:[%s223 + $0x50] sm:$0xff] %v591
        %608 = vst [vmem:[%s223 + $0x58] sm:$0xff] %v592
        %609 = vst [vmem:[%s223 + $0x60] sm:$0xff] %v593
        %610 = vst [vmem:[%s223 + $0x68] sm:$0xff] %v594
        %611 = vst [vmem:[%s223 + $0x70] sm:$0xff] %v595
        %612 = vst [vmem:[%s223 + $0x78] sm:$0xff] %v596
        %s613 = sand.u32 %s97, 1
        %s614 = scalar_lea.sflag [#allocation4], %s613
        %s615 = sand.u32 %s97, 1
        %s616 = smul.addr %s615, 128
        %s617 = scalar_lea.vmem [#allocation8], %s616
        // Predicated region
        $region45: #{tpu_custom_call.1} parent=31 // pred_check
          %p618 = pneg %p107
        $region46: #{tpu_custom_call.1} parent=31 // pred_check_branch
          %620 = sbr.rel (%p618) target = $region48
        $region47: #{tpu_custom_call.1} parent=31 // pred_region
          %s621 = smul.u32 16, %s21
          %623 = vsyncadd %s614, 0
          %s624 = smul.addr %s621, 8
          %s625 = scalar_lea.hbm %s3, %s624
          %s626 = sshll.u32 %s617, 4
          %s627 = int_to_ptr.vmem [resolvable:$true] %s626
          %s628 = sshll.u32 %s625, 4
          %s629 = int_to_ptr.hbm [resolvable:$true] %s628
          %634 = dma.vmem_to_hbm [thread:$0]  %s627, 2048, %s629, %s614, 128, 128, 8
        $region48: #{tpu_custom_call.1} parent=31 // pred_fallthru
          _
      $region32: #{tpu_custom_call.1} parent=5 // pred_fallthru
        _
      %p635 = scmp.le.s32.totalorder 2, %s16
      // Predicated region
      $region49: #{tpu_custom_call.1} parent=5 // pred_check
        %p636 = pneg %p635
      $region50: #{tpu_custom_call.1} parent=5 // pred_check_branch
        %638 = sbr.rel (%p636) target = $region52
      $region51: #{tpu_custom_call.1} parent=5 // pred_region
        %s639 = ssub.s32 %s16, 2
        // Predicated region
        $region53: #{tpu_custom_call.1} parent=51 // pred_check
          %p640 = pneg %p113
        $region54: #{tpu_custom_call.1} parent=51 // pred_check_branch
          %642 = sbr.rel (%p640) target = $region56
        $region55: #{tpu_custom_call.1} parent=51 // pred_region
          %s643 = sand.u32 %s98, 1
          %s644 = scalar_lea.sflag [#allocation4], %s643
          %s645 = sand.u32 %s98, 1
          %s646 = smul.addr %s645, 128
          %s647 = scalar_lea.vmem [#allocation8], %s646
          %649 = dma.done %s644, 2048
        $region56: #{tpu_custom_call.1} parent=51 // pred_fallthru
          _
      $region52: #{tpu_custom_call.1} parent=5 // pred_fallthru
        _
    $region6: #{tpu_custom_call.1} parent=1 // loop_footer
      %s20 = sadd.s32 1, %s16
    $region7: #{tpu_custom_call.1} parent=1 // loop_footer_branch
      %15 = sbr.rel target = $region3
    $region8: #{tpu_custom_call.1} parent=1 // loop_exit
      _
    %650 = vsyncpa [#allocation3], 1
    %s651 = scalar_lea.sflag [#allocation3], 1
    %652 = vsyncpa %s651, 1
    %653 = vsyncpa [#allocation6], 1
    %654 = vsyncpa [#allocation4], 1
    %s655 = scalar_lea.sflag [#allocation4], 1
    %656 = vsyncpa %s655, 1

</llo_original>
